<compile_context>
chip_gen: v6e
topology: v6e:2x2x1
jax: 0.10.0
libtpu: 0.0.40
codegen_flags: <defaults>
</compile_context>

<pallas_src>
import jax
import jax.numpy as jnp
from jax.experimental import pallas as pl
from jax.experimental.pallas import tpu as pltpu


# ----------------------------------------------------------------------------
# Kernels: streaming affine / add over a (row_tile, hw_tile) block.
# ----------------------------------------------------------------------------
def _affine_kernel(x_ref, scale_ref, shift_ref, o_ref):
    # x_ref:     (row_tile, hw_tile)
    # scale_ref: (row_tile, 1)   -> broadcast along the 128-lane axis
    # shift_ref: (row_tile, 1)
    o_ref[...] = (scale_ref[...] * x_ref[...] + shift_ref[...]).astype(o_ref.dtype)


def _shift_kernel(x_ref, shift_ref, o_ref):
    # out = x + shift   (no multiply when use_affine_level=False)
    o_ref[...] = (x_ref[...] + shift_ref[...]).astype(o_ref.dtype)


# ----------------------------------------------------------------------------
# Tiling helpers.
# ----------------------------------------------------------------------------
def _round_up(x, m):
    return -(-x // m) * m


def _pick_tile(total, max_tile, unit):
    """Largest multiple of `unit` <= max_tile that divides `total`.
    `total` is guaranteed to be a multiple of `unit`."""
    t = min(total, max(unit, (max_tile // unit) * unit))
    t = max(unit, (t // unit) * unit)
    while total % t:
        t -= unit
    return t


def _sublane_unit(dtype):
    """Packed sublane granularity: 8 for 4-byte, 16 for 2-byte, 32 for 1-byte."""
    return max(8, 32 // jnp.dtype(dtype).itemsize)


# ----------------------------------------------------------------------------
# Wrapper.
# ----------------------------------------------------------------------------
def feature_wise_affine(x, noise_embed, weight, bias, *, use_affine_level=False):
    """x: (B, C, H, W) NCHW; noise_embed: (B, D_in);
    weight: (D_in, C*(1+use_affine_level))  (PyTorch nn.Linear weight, transposed);
    bias: (C*(1+use_affine_level),)."""
    B, C, H, W = x.shape
    D_in = noise_embed.shape[-1]
    C_tot = C * (1 + int(use_affine_level))
    assert weight.shape == (D_in, C_tot)
    assert bias.shape == (C_tot,)

    # --- Hoisted Linear: one XLA matmul on the MXU with f32 accumulation. ---
    y = (noise_embed.astype(jnp.float32) @ weight.astype(jnp.float32)
         + bias.astype(jnp.float32))                          # (B, C_tot)

    rows = B * C
    if use_affine_level:
        gamma = y[:, :C]                                      # (B, C)
        beta = y[:, C:]                                       # (B, C)
        scale = (1.0 + gamma).astype(x.dtype).reshape(rows, 1)
        shift = beta.astype(x.dtype).reshape(rows, 1)
    else:
        scale = None
        shift = y.astype(x.dtype).reshape(rows, 1)

    # --- Lane-dense layout: (B*C, H*W) (free reshape of contiguous NCHW). ---
    HW = H * W
    x_flat = x.reshape(rows, HW)

    # Pad rows -> multiple of the dtype's sublane unit, HW -> multiple of 128
    # lanes, so every store is an unmasked full-width vst.  No-op when already
    # aligned (as in the demo shapes).
    r_unit = _sublane_unit(x.dtype)
    rows_p = _round_up(rows, r_unit)
    hw_p = _round_up(HW, 128)
    if rows_p != rows or hw_p != HW:
        x_flat = jnp.pad(x_flat, ((0, rows_p - rows), (0, hw_p - HW)))
        shift = jnp.pad(shift, ((0, rows_p - rows), (0, 0)))
        if scale is not None:
            scale = jnp.pad(scale, ((0, rows_p - rows), (0, 0)))

    # Block sizes: <= 256 rows x 2048 lanes (<= 2 MiB f32 per block); with
    # input + output double-buffered that is <= ~8 MiB of VMEM — comfortably
    # inside every chip's budget while sitting at the HBM roofline.
    row_tile = _pick_tile(rows_p, 256, r_unit)
    hw_tile = _pick_tile(hw_p, 2048, 128)
    grid = (rows_p // row_tile, hw_p // hw_tile)

    x_spec = pl.BlockSpec((row_tile, hw_tile), lambda r, h: (r, h))
    col_spec = pl.BlockSpec((row_tile, 1), lambda r, h: (r, 0))
    out_spec = pl.BlockSpec((row_tile, hw_tile), lambda r, h: (r, h))

    compiler_params = pltpu.CompilerParams(
        dimension_semantics=("parallel", "parallel"),
        vmem_limit_bytes=32 * 1024 * 1024,
    )

    if use_affine_level:
        out_p = pl.pallas_call(
            _affine_kernel,
            out_shape=jax.ShapeDtypeStruct((rows_p, hw_p), x.dtype),
            grid=grid,
            in_specs=[x_spec, col_spec, col_spec],
            out_specs=out_spec,
            compiler_params=compiler_params,
        )(x_flat, scale, shift)
    else:
        out_p = pl.pallas_call(
            _shift_kernel,
            out_shape=jax.ShapeDtypeStruct((rows_p, hw_p), x.dtype),
            grid=grid,
            in_specs=[x_spec, col_spec],
            out_specs=out_spec,
            compiler_params=compiler_params,
        )(x_flat, shift)

    return out_p[:rows, :HW].reshape(B, C, H, W)


# ----------------------------------------------------------------------------
# Pure-JAX reference.
# ----------------------------------------------------------------------------
def _reference(x, noise_embed, weight, bias, *, use_affine_level):
    B, C, H, W = x.shape
    y = noise_embed @ weight + bias            # (B, C_tot)
    y = y.reshape(B, -1, 1, 1)
    if use_affine_level:
        gamma, beta = jnp.split(y, 2, axis=1)
        return (1.0 + gamma) * x + beta
    return x + y


if __name__ == "__main__":
    # Small shapes consistent with the module's forward.
    B, C_out, H, W = 2, 4, 16, 16
    D_in = 32

    key = jax.random.PRNGKey(0)
    kx, ke, kw0, kb0, kw1, kb1 = jax.random.split(key, 6)

    x = jax.random.normal(kx, (B, C_out, H, W), dtype=jnp.float32)
    noise_embed = jax.random.normal(ke, (B, D_in), dtype=jnp.float32)

    ok = True
    for use_affine_level, kw, kb in ((False, kw0, kb0), (True, kw1, kb1)):
        C_tot = C_out * (1 + int(use_affine_level))
        # Deterministic Linear params (stored already-transposed: (D_in, C_tot)).
        bound = 1.0 / (D_in ** 0.5)
        weight = jax.random.uniform(kw, (D_in, C_tot), jnp.float32, -bound, bound)
        bias = jax.random.uniform(kb, (C_tot,), jnp.float32, -bound, bound)

        out = feature_wise_affine(x, noise_embed, weight, bias,
                                  use_affine_level=use_affine_level)
        out = jax.block_until_ready(out)
        ref = _reference(x, noise_embed, weight, bias,
                         use_affine_level=use_affine_level)
        ok = ok and bool(jnp.allclose(out, ref, atol=1e-5, rtol=1e-5))

    if ok:
        print("KERNEL_OK")
    else:
        print("KERNEL_MISMATCH")
</pallas_src>

<mosaic_0001>
module attributes {stable_mosaic.version = 11 : i64} {
  func.func @_shift_kernel(%arg0: i32, %arg1: i32, %arg2: memref<8x256xf32, #tpu.memory_space<vmem>>, %arg3: memref<8x1xf32, #tpu.memory_space<vmem>>, %arg4: memref<8x256xf32, #tpu.memory_space<vmem>>) attributes {dimension_semantics = [#tpu.dimension_semantics<parallel>, #tpu.dimension_semantics<parallel>], iteration_bounds = array<i64: 1, 1>, scalar_prefetch = 0 : i64, scratch_operands = 0 : i64, tpu.core_type = #tpu.core_type<tc>, window_params = [{transform_indices = @transform_0, window_bounds = array<i64: 8, 256>}, {transform_indices = @transform_1, window_bounds = array<i64: 8, 1>}, {transform_indices = @transform_2, window_bounds = array<i64: 8, 256>}]} {
    %c0 = arith.constant 0 : index
    %c0_0 = arith.constant 0 : index
    %0 = vector.load %arg2[%c0, %c0_0] : memref<8x256xf32, #tpu.memory_space<vmem>>, vector<8x256xf32>
    %c0_1 = arith.constant 0 : index
    %c0_2 = arith.constant 0 : index
    %1 = vector.load %arg3[%c0_1, %c0_2] : memref<8x1xf32, #tpu.memory_space<vmem>>, vector<8x1xf32>
    %2 = vector.broadcast %1 : vector<8x1xf32> to vector<8x256xf32>
    %3 = arith.addf %0, %2 : vector<8x256xf32>
    %c0_3 = arith.constant 0 : index
    %c0_4 = arith.constant 0 : index
    %4 = vector.load %arg4[%c0_3, %c0_4] : memref<8x256xf32, #tpu.memory_space<vmem>>, vector<8x256xf32>
    tpu.vector_store %arg4[%c0_3, %c0_4], %3 {strides = array<i32>} : memref<8x256xf32, #tpu.memory_space<vmem>>, vector<8x256xf32>,
    return
  }
  func.func @transform_0(%arg0: i32, %arg1: i32) -> (i32, i32) {
    %c0_i32 = arith.constant 0 : i32
    return %arg0, %arg1 : i32, i32
  }
  func.func @transform_1(%arg0: i32, %arg1: i32) -> (i32, i32) {
    %c0_i32 = arith.constant 0 : i32
    %c0_i32_0 = arith.constant 0 : i32
    return %arg0, %c0_i32 : i32, i32
  }
  func.func @transform_2(%arg0: i32, %arg1: i32) -> (i32, i32) {
    %c0_i32 = arith.constant 0 : i32
    return %arg0, %arg1 : i32, i32
  }
}

</mosaic_0001>

<llo_original>
// kernel: tpu_custom_call.1
$region0: #{tpu_custom_call.1}
  #allocation0 [shape = 'u32[]', space=smem, size = 0x4, offset = 0x4, fixed_abs, tag = 'smem constant byte address 0x4 - core index']
  #allocation1 [shape = 'u32[144,128]{1,0:T(1,128)}', space=vmem, size = 0x12000, scoped, tag = 'internal scratch']
  %s0 = inlined_call_operand.hbm [shape: f32[8,256], index: 0, kind: input, shape index: {}]
  %s1 = inlined_call_operand.vmem [shape: f32[8,1], index: 1, kind: input, shape index: {}]
  %s2 = inlined_call_operand.hbm [shape: f32[8,256], index: 2, kind: output, shape index: {}]
  %s3 = sld [smem:[#allocation0]]
  $region22: #{tpu_custom_call.1} parent=0
    _
  %s5 = ssub.s32 1, %s3
  %s6 = scalar_select 0, %s5, %s3
  $region1: #{tpu_custom_call.1} parent=0
    #allocation2 [shape = 'u8[8192]{0}', space=vmem, size = 0x2000, scoped, tag = 'input window, operand 0, single buffered']
    #allocation3 [shape = 's32[1]{0}', space=sflag, size = 0x4, scoped, tag = 'scoped memory for tpu_custom_call.1']
    #allocation4 [shape = 's32[1]{0}', space=sflag, size = 0x4, scoped, tag = 'scoped memory for tpu_custom_call.1']
    #allocation5 [shape = 'u8[8192]{0}', space=vmem, size = 0x2000, scoped, tag = 'output window, operand 0, single buffered']
    %7 = vsyncpa [#allocation3], 0
    %8 = vsyncpa [#allocation4], 0
    // Predicated region
    $region2: #{tpu_custom_call.1} parent=1 // pred_check
      _
    $region3: #{tpu_custom_call.1} parent=1 // pred_check_branch
      %10 = sbr.rel (0) target = $region5
    $region4: #{tpu_custom_call.1} parent=1 // pred_region
      %s12 = ssub.s32 256, 256
      %13 = vsyncadd [#allocation3], %s12
      %s15 = sshll.u32 [#allocation2], 4
      %s16 = int_to_ptr.vmem [resolvable:$true] %s15
      %18 = dma.hbm_to_vmem [thread:$0]  %s0, 256, %s16, [#allocation3]
    $region5: #{tpu_custom_call.1} parent=1 // pred_fallthru
      _
    // Predicated region
    $region6: #{tpu_custom_call.1} parent=1 // pred_check
      _
    $region7: #{tpu_custom_call.1} parent=1 // pred_check_branch
      %20 = sbr.rel (0) target = $region9
    $region8: #{tpu_custom_call.1} parent=1 // pred_region
      _
    $region9: #{tpu_custom_call.1} parent=1 // pred_fallthru
      _
    // Predicated region
    $region10: #{tpu_custom_call.1} parent=1 // pred_check
      _
    $region11: #{tpu_custom_call.1} parent=1 // pred_check_branch
      %22 = sbr.rel (0) target = $region13
    $region12: #{tpu_custom_call.1} parent=1 // pred_region
      %23 = dma.done [#allocation3], 256
    $region13: #{tpu_custom_call.1} parent=1 // pred_fallthru
      _
    %v24 = vld [vmem:[#allocation2] sm:$0xff]
    %v25 = vld [vmem:[#allocation2 + $0x8] sm:$0xff]
    %v26 = vld [vmem:[%s1] sm:$0xff]
    %28 = vset.pattern.permute.xlu0 0
    %29 = vperm.xlu0 %28, %v26
    %v30 = vpop.permute.xlu0 %29
    %v32 = vadd.f32 %v24, %v30
    %v33 = vadd.f32 %v25, %v30
    %34 = vst [vmem:[#allocation5] sm:$0xff] %v32
    %35 = vst [vmem:[#allocation5 + $0x8] sm:$0xff] %v33
    // Predicated region
    $region14: #{tpu_custom_call.1} parent=1 // pred_check
      _
    $region15: #{tpu_custom_call.1} parent=1 // pred_check_branch
      %37 = sbr.rel (0) target = $region17
    $region16: #{tpu_custom_call.1} parent=1 // pred_region
      %s39 = ssub.s32 256, 256
      %40 = vsyncadd [#allocation4], %s39
      %s42 = sshll.u32 [#allocation5], 4
      %s43 = int_to_ptr.vmem [resolvable:$true] %s42
      %45 = dma.vmem_to_hbm [thread:$0]  %s43, 256, %s2, [#allocation4]
    $region17: #{tpu_custom_call.1} parent=1 // pred_fallthru
      _
    // Predicated region
    $region18: #{tpu_custom_call.1} parent=1 // pred_check
      _
    $region19: #{tpu_custom_call.1} parent=1 // pred_check_branch
      %47 = sbr.rel (0) target = $region21
    $region20: #{tpu_custom_call.1} parent=1 // pred_region
      %48 = dma.done [#allocation4], 256
    $region21: #{tpu_custom_call.1} parent=1 // pred_fallthru
      _
    %49 = vsyncpa [#allocation3], 1
    %50 = vsyncpa [#allocation4], 1

</llo_original>
